<compile_context>
chip_gen: v5e
topology: v5e:2x2
jax: 0.10.0
libtpu: 0.0.40
codegen_flags: <defaults>
</compile_context>

<pallas_src>
import jax
import jax.numpy as jnp
from jax.experimental import pallas as pl
from jax.experimental.pallas import tpu as pltpu


def _round_up(x, m):
    return (x + m - 1) // m * m


def _make_kernel(count, eps):
    def kernel(cols_ref, w_ref, gamma_ref, beta_ref, out_ref,
               sum_ref, sumsq_ref, scale_ref, shift_ref):
        pass_idx = pl.program_id(0)      # 0: batch-stats pass, 1: apply pass
        tile_idx = pl.program_id(1)
        n_tiles = pl.num_programs(1)

        # Convolution as two MXU matmuls (one per pool-parity plane), f32 accumulate.
        w = w_ref[...]
        a0 = jnp.dot(cols_ref[0], w, preferred_element_type=jnp.float32)  # (tm, C_pad)
        a1 = jnp.dot(cols_ref[1], w, preferred_element_type=jnp.float32)

        @pl.when(pass_idx == 0)
        def _stats():
            @pl.when(tile_idx == 0)
            def _init():
                sum_ref[...] = jnp.zeros_like(sum_ref)
                sumsq_ref[...] = jnp.zeros_like(sumsq_ref)

            sum_ref[...] += (jnp.sum(a0, axis=0, keepdims=True)
                             + jnp.sum(a1, axis=0, keepdims=True))
            sumsq_ref[...] += (jnp.sum(a0 * a0, axis=0, keepdims=True)
                               + jnp.sum(a1 * a1, axis=0, keepdims=True))

            @pl.when(tile_idx == n_tiles - 1)
            def _finalize():
                # BatchNorm1d, training mode: biased variance over all (n, l).
                # TODO(synk): running_mean/running_var tracking (training side
                # effect) is not materialized.
                inv_n = 1.0 / count
                mean = sum_ref[...] * inv_n
                var = sumsq_ref[...] * inv_n - mean * mean
                scale = gamma_ref[...] * jax.lax.rsqrt(var + eps)
                scale_ref[...] = scale
                shift_ref[...] = beta_ref[...] - mean * scale

        @pl.when(pass_idx == 1)
        def _apply():
            scale = scale_ref[...]
            shift = shift_ref[...]
            y0 = jnp.maximum(a0 * scale + shift, 0.0)   # fused BN + ReLU
            y1 = jnp.maximum(a1 * scale + shift, 0.0)
            out_ref[...] = jnp.maximum(y0, y1)          # MaxPool1d(2)

    return kernel


def conv1d_block(x, weight, bias, gamma, beta, *,
                 shape=3, stride=1, pooling=2, tm=None, eps=1e-5):
    """Pallas implementation of Conv_1d.forward for NCL f32 input `x`."""
    del bias  # per-channel constant is exactly cancelled by train-mode BN mean subtraction
    assert stride == 1 and pooling == 2 and shape % 2 == 1   # module defaults
    N, C_in, L = x.shape
    C_out = weight.shape[0]
    KW = shape
    pad = shape // 2
    # TODO(synk): PyTorch MaxPool1d(2) floor-truncates odd L; only even L supported here.
    assert L % pooling == 0
    L2 = L // pooling
    K = C_in * KW

    # ---- im2col + parity reordering (glue, plain JAX; bf16 halves its HBM traffic) ----
    xb = x.astype(jnp.bfloat16)
    xp = jnp.pad(xb, ((0, 0), (0, 0), (pad, pad)))
    taps = [xp[:, :, kw:kw + L] for kw in range(KW)]
    cols = jnp.stack(taps, axis=-1)                 # (N, C_in, L, KW)
    cols = jnp.transpose(cols, (0, 2, 1, 3))        # (N, L, C_in, KW)
    cols = cols.reshape(N, L2, pooling, K)          # column k = c_in*KW + kw
    cols = jnp.transpose(cols, (2, 0, 1, 3))        # (parity, N, L2, K)
    cols = cols.reshape(pooling, N * L2, K)

    P_half = N * L2                                 # rows per parity plane
    SUB = 16                                        # bf16 sublane packing
    if tm is None:
        tm = 512                                    # default; fits v7x 64 MiB with wide margin
    tm = _round_up(min(tm, _round_up(P_half, SUB)), SUB)
    P_pad = _round_up(P_half, tm)
    n_tiles = P_pad // tm
    if P_pad != P_half:
        # zero rows contribute nothing to BN sums (no bias added in-kernel)
        cols = jnp.pad(cols, ((0, 0), (0, P_pad - P_half), (0, 0)))

    C_pad = _round_up(C_out, 128)                   # lane-dense output / MXU feed
    w2d = weight.reshape(C_out, K).T.astype(jnp.bfloat16)        # (K, C_out)
    w2d = jnp.pad(w2d, ((0, 0), (0, C_pad - C_out)))
    g2d = jnp.pad(gamma.astype(jnp.float32).reshape(1, C_out),
                  ((0, 0), (0, C_pad - C_out)))
    bt2d = jnp.pad(beta.astype(jnp.float32).reshape(1, C_out),
                   ((0, 0), (0, C_pad - C_out)))

    count = float(N * L)                            # BN statistics count (real positions)
    kernel = _make_kernel(count, eps)

    flops = 2 * 2 * (2 * P_pad) * K * C_pad         # matmul recomputed in both passes
    bytes_accessed = (2 * cols.size * 2             # cols read twice (bf16)
                      + P_pad * C_pad * 4           # output
                      + w2d.size * 2 + 2 * C_pad * 4)

    grid_spec = pltpu.PrefetchScalarGridSpec(
        num_scalar_prefetch=0,
        grid=(2, n_tiles),                          # (pass, row_tile)
        in_specs=[
            pl.BlockSpec((pooling, tm, K), lambda p, t: (0, t, 0)),   # cols tile
            pl.BlockSpec((K, C_pad), lambda p, t: (0, 0)),            # weights (resident)
            pl.BlockSpec((1, C_pad), lambda p, t: (0, 0)),            # gamma
            pl.BlockSpec((1, C_pad), lambda p, t: (0, 0)),            # beta
        ],
        # p*t: every stats-pass iteration parks on output block 0 (never written,
        # never flushed mid-pass); the apply pass walks 0..n_tiles-1 writing each
        # block exactly once -> no wasted HBM writebacks in pass 0.
        out_specs=pl.BlockSpec((tm, C_pad), lambda p, t: (p * t, 0)),
        scratch_shapes=[pltpu.VMEM((1, C_pad), jnp.float32)] * 4,     # sum, sumsq, scale, shift
    )

    out_flat = pl.pallas_call(
        kernel,
        out_shape=jax.ShapeDtypeStruct((P_pad, C_pad), jnp.float32),
        grid_spec=grid_spec,
        compiler_params=pltpu.CompilerParams(
            # both axes carry the cross-tile BN-stat accumulator -> sequential
            dimension_semantics=("arbitrary", "arbitrary"),
            vmem_limit_bytes=32 * 1024 * 1024,
        ),
        cost_estimate=pl.CostEstimate(flops=flops, transcendentals=C_pad,
                                      bytes_accessed=bytes_accessed),
    )(cols, w2d, g2d, bt2d)

    out = out_flat[:P_half, :C_out].reshape(N, L2, C_out)   # rows were (n, l_out)
    return jnp.transpose(out, (0, 2, 1))                    # back to NCL


def _reference(x, weight, bias, gamma, beta, eps=1e-5):
    # bf16 conv operands / f32 accumulate to mirror the kernel's dtype choice.
    y = jax.lax.conv_general_dilated(
        x.astype(jnp.bfloat16), weight.astype(jnp.bfloat16),
        window_strides=(1,), padding="SAME",
        dimension_numbers=("NCH", "OIH", "NCH"),
        preferred_element_type=jnp.float32)
    y = y + bias[None, :, None]
    mean = jnp.mean(y, axis=(0, 2), keepdims=True)
    var = jnp.mean(jnp.square(y - mean), axis=(0, 2), keepdims=True)
    y = (y - mean) / jnp.sqrt(var + eps)
    y = y * gamma[None, :, None] + beta[None, :, None]
    y = jnp.maximum(y, 0.0)
    return jax.lax.reduce_window(y, -jnp.inf, jax.lax.max,
                                 (1, 1, 2), (1, 1, 2), "VALID")


if __name__ == "__main__":
    N, C_in, C_out, L = 2, 4, 8, 32

    key = jax.random.PRNGKey(0)
    kx, kw, kb = jax.random.split(key, 3)
    x = jax.random.normal(kx, (N, C_in, L), jnp.float32)

    # Deterministic parameter init (shapes from Conv_1d.__init__; Kaiming-uniform-style bound).
    fan_in = C_in * 3
    bound = 1.0 / (fan_in ** 0.5)
    weight = jax.random.uniform(kw, (C_out, C_in, 3), jnp.float32, -bound, bound)
    bias = jax.random.uniform(kb, (C_out,), jnp.float32, -bound, bound)
    gamma = jnp.ones((C_out,), jnp.float32)    # BatchNorm1d default init
    beta = jnp.zeros((C_out,), jnp.float32)

    # tm=16 forces two row tiles at this toy size to exercise the two-pass grid and
    # the cross-tile BN-stat accumulation; real sizes use the default tm=512 (sweep).
    out = conv1d_block(x, weight, bias, gamma, beta, tm=16)
    out = jax.block_until_ready(out)

    ref = _reference(x, weight, bias, gamma, beta)
    assert out.shape == (N, C_out, L // 2), out.shape
    assert jnp.allclose(out, ref, atol=2e-3, rtol=2e-3), float(jnp.max(jnp.abs(out - ref)))
    print("KERNEL_OK")
</pallas_src>

<mosaic_0001>
module attributes {stable_mosaic.version = 11 : i64} {
  func.func @kernel(%arg0: i32, %arg1: i32, %arg2: memref<2x16x12xbf16, #tpu.memory_space<vmem>>, %arg3: memref<12x128xbf16, #tpu.memory_space<vmem>>, %arg4: memref<1x128xf32, #tpu.memory_space<vmem>>, %arg5: memref<1x128xf32, #tpu.memory_space<vmem>>, %arg6: memref<16x128xf32, #tpu.memory_space<vmem>>, %arg7: memref<1x128xf32, #tpu.memory_space<vmem>>, %arg8: memref<1x128xf32, #tpu.memory_space<vmem>>, %arg9: memref<1x128xf32, #tpu.memory_space<vmem>>, %arg10: memref<1x128xf32, #tpu.memory_space<vmem>>) attributes {dimension_semantics = [#tpu.dimension_semantics<arbitrary>, #tpu.dimension_semantics<arbitrary>], iteration_bounds = array<i64: 2, 2>, scalar_prefetch = 0 : i64, scratch_operands = 4 : i64, tpu.core_type = #tpu.core_type<tc>, window_params = [{transform_indices = @transform_0, window_bounds = array<i64: 2, 16, 12>}, {pipeline_mode = #tpu.pipeline_mode<synchronous>, transform_indices = @transform_1, window_bounds = array<i64: 12, 128>}, {pipeline_mode = #tpu.pipeline_mode<synchronous>, transform_indices = @transform_2, window_bounds = array<i64: 1, 128>}, {pipeline_mode = #tpu.pipeline_mode<synchronous>, transform_indices = @transform_3, window_bounds = array<i64: 1, 128>}, {transform_indices = @transform_4, window_bounds = array<i64: 16, 128>}]} {
    %c0 = arith.constant 0 : index
    %c0_0 = arith.constant 0 : index
    %0 = vector.load %arg3[%c0, %c0_0] : memref<12x128xbf16, #tpu.memory_space<vmem>>, vector<12x128xbf16>
    %c0_1 = arith.constant 0 : index
    %c0_2 = arith.constant 0 : index
    %c0_3 = arith.constant 0 : index
    %1 = vector.load %arg2[%c0_1, %c0_2, %c0_3] : memref<2x16x12xbf16, #tpu.memory_space<vmem>>, vector<1x16x12xbf16>
    %2 = vector.shape_cast %1 : vector<1x16x12xbf16> to vector<16x12xbf16>
    %cst = arith.constant dense<0.000000e+00> : vector<16x128xf32>
    %3 = tpu.matmul %2, %0, %cst {dimension_numbers = #tpu.dot_dimension_numbers<[1], [0], [0], [1], [0, 0, 1, 1], [], []>} : vector<16x12xbf16>, vector<12x128xbf16>, vector<16x128xf32> -> vector<16x128xf32>
    %c1 = arith.constant 1 : index
    %c0_4 = arith.constant 0 : index
    %c0_5 = arith.constant 0 : index
    %4 = vector.load %arg2[%c1, %c0_4, %c0_5] : memref<2x16x12xbf16, #tpu.memory_space<vmem>>, vector<1x16x12xbf16>
    %5 = vector.shape_cast %4 : vector<1x16x12xbf16> to vector<16x12xbf16>
    %cst_6 = arith.constant dense<0.000000e+00> : vector<16x128xf32>
    %6 = tpu.matmul %5, %0, %cst_6 {dimension_numbers = #tpu.dot_dimension_numbers<[1], [0], [0], [1], [0, 0, 1, 1], [], []>} : vector<16x12xbf16>, vector<12x128xbf16>, vector<16x128xf32> -> vector<16x128xf32>
    %c0_i32 = arith.constant 0 : i32
    %7 = arith.cmpi eq, %arg0, %c0_i32 : i32
    %8 = arith.extui %7 : i1 to i32
    %c0_i32_7 = arith.constant 0 : i32
    %9 = arith.cmpi ne, %8, %c0_i32_7 : i32
    scf.if %9 {
      %c0_i32_9 = arith.constant 0 : i32
      %13 = arith.cmpi eq, %arg1, %c0_i32_9 : i32
      %14 = arith.extui %13 : i1 to i32
      %c0_i32_10 = arith.constant 0 : i32
      %15 = arith.cmpi ne, %14, %c0_i32_10 : i32
      scf.if %15 {
        %cst_25 = arith.constant 0.000000e+00 : f32
        %37 = vector.broadcast %cst_25 : f32 to vector<1x128xf32>
        %c0_26 = arith.constant 0 : index
        %c0_27 = arith.constant 0 : index
        %38 = vector.load %arg7[%c0_26, %c0_27] : memref<1x128xf32, #tpu.memory_space<vmem>>, vector<1x128xf32>
        tpu.vector_store %arg7[%c0_26, %c0_27], %37 {strides = array<i32>} : memref<1x128xf32, #tpu.memory_space<vmem>>, vector<1x128xf32>,
        %cst_28 = arith.constant 0.000000e+00 : f32
        %39 = vector.broadcast %cst_28 : f32 to vector<1x128xf32>
        %c0_29 = arith.constant 0 : index
        %c0_30 = arith.constant 0 : index
        %40 = vector.load %arg8[%c0_29, %c0_30] : memref<1x128xf32, #tpu.memory_space<vmem>>, vector<1x128xf32>
        tpu.vector_store %arg8[%c0_29, %c0_30], %39 {strides = array<i32>} : memref<1x128xf32, #tpu.memory_space<vmem>>, vector<1x128xf32>,
      } else {
      }
      %c0_11 = arith.constant 0 : index
      %c0_12 = arith.constant 0 : index
      %16 = vector.load %arg7[%c0_11, %c0_12] : memref<1x128xf32, #tpu.memory_space<vmem>>, vector<1x128xf32>
      %cst_13 = arith.constant dense<0.000000e+00> : vector<128xf32>
      %17 = vector.multi_reduction <add>, %3, %cst_13 [0] : vector<16x128xf32> to vector<128xf32>
      %18 = vector.shape_cast %17 : vector<128xf32> to vector<1x128xf32>
      %cst_14 = arith.constant dense<0.000000e+00> : vector<128xf32>
      %19 = vector.multi_reduction <add>, %6, %cst_14 [0] : vector<16x128xf32> to vector<128xf32>
      %20 = vector.shape_cast %19 : vector<128xf32> to vector<1x128xf32>
      %21 = arith.addf %18, %20 : vector<1x128xf32>
      %22 = arith.addf %16, %21 : vector<1x128xf32>
      %c0_15 = arith.constant 0 : index
      %c0_16 = arith.constant 0 : index
      %23 = vector.load %arg7[%c0_15, %c0_16] : memref<1x128xf32, #tpu.memory_space<vmem>>, vector<1x128xf32>
      tpu.vector_store %arg7[%c0_15, %c0_16], %22 {strides = array<i32>} : memref<1x128xf32, #tpu.memory_space<vmem>>, vector<1x128xf32>,
      %c0_17 = arith.constant 0 : index
      %c0_18 = arith.constant 0 : index
      %24 = vector.load %arg8[%c0_17, %c0_18] : memref<1x128xf32, #tpu.memory_space<vmem>>, vector<1x128xf32>
      %25 = arith.mulf %3, %3 : vector<16x128xf32>
      %cst_19 = arith.constant dense<0.000000e+00> : vector<128xf32>
      %26 = vector.multi_reduction <add>, %25, %cst_19 [0] : vector<16x128xf32> to vector<128xf32>
      %27 = vector.shape_cast %26 : vector<128xf32> to vector<1x128xf32>
      %28 = arith.mulf %6, %6 : vector<16x128xf32>
      %cst_20 = arith.constant dense<0.000000e+00> : vector<128xf32>
      %29 = vector.multi_reduction <add>, %28, %cst_20 [0] : vector<16x128xf32> to vector<128xf32>
      %30 = vector.shape_cast %29 : vector<128xf32> to vector<1x128xf32>
      %31 = arith.addf %27, %30 : vector<1x128xf32>
      %32 = arith.addf %24, %31 : vector<1x128xf32>
      %c0_21 = arith.constant 0 : index
      %c0_22 = arith.constant 0 : index
      %33 = vector.load %arg8[%c0_21, %c0_22] : memref<1x128xf32, #tpu.memory_space<vmem>>, vector<1x128xf32>
      tpu.vector_store %arg8[%c0_21, %c0_22], %32 {strides = array<i32>} : memref<1x128xf32, #tpu.memory_space<vmem>>, vector<1x128xf32>,
      %c1_i32_23 = arith.constant 1 : i32
      %34 = arith.cmpi eq, %arg1, %c1_i32_23 : i32
      %35 = arith.extui %34 : i1 to i32
      %c0_i32_24 = arith.constant 0 : i32
      %36 = arith.cmpi ne, %35, %c0_i32_24 : i32
      scf.if %36 {
        %c0_25 = arith.constant 0 : index
        %c0_26 = arith.constant 0 : index
        %37 = vector.load %arg7[%c0_25, %c0_26] : memref<1x128xf32, #tpu.memory_space<vmem>>, vector<1x128xf32>
        %cst_27 = arith.constant 1.562500e-02 : f32
        %38 = vector.broadcast %cst_27 : f32 to vector<1x128xf32>
        %39 = arith.mulf %37, %38 : vector<1x128xf32>
        %c0_28 = arith.constant 0 : index
        %c0_29 = arith.constant 0 : index
        %40 = vector.load %arg8[%c0_28, %c0_29] : memref<1x128xf32, #tpu.memory_space<vmem>>, vector<1x128xf32>
        %cst_30 = arith.constant 1.562500e-02 : f32
        %41 = vector.broadcast %cst_30 : f32 to vector<1x128xf32>
        %42 = arith.mulf %40, %41 : vector<1x128xf32>
        %43 = arith.mulf %39, %39 : vector<1x128xf32>
        %44 = arith.subf %42, %43 : vector<1x128xf32>
        %c0_31 = arith.constant 0 : index
        %c0_32 = arith.constant 0 : index
        %45 = vector.load %arg4[%c0_31, %c0_32] : memref<1x128xf32, #tpu.memory_space<vmem>>, vector<1x128xf32>
        %cst_33 = arith.constant 9.99999974E-6 : f32
        %46 = vector.broadcast %cst_33 : f32 to vector<1x128xf32>
        %47 = arith.addf %44, %46 : vector<1x128xf32>
        %48 = math.rsqrt %47 : vector<1x128xf32>
        %49 = arith.mulf %45, %48 : vector<1x128xf32>
        %c0_34 = arith.constant 0 : index
        %c0_35 = arith.constant 0 : index
        %50 = vector.load %arg9[%c0_34, %c0_35] : memref<1x128xf32, #tpu.memory_space<vmem>>, vector<1x128xf32>
        tpu.vector_store %arg9[%c0_34, %c0_35], %49 {strides = array<i32>} : memref<1x128xf32, #tpu.memory_space<vmem>>, vector<1x128xf32>,
        %c0_36 = arith.constant 0 : index
        %c0_37 = arith.constant 0 : index
        %51 = vector.load %arg5[%c0_36, %c0_37] : memref<1x128xf32, #tpu.memory_space<vmem>>, vector<1x128xf32>
        %52 = arith.mulf %39, %49 : vector<1x128xf32>
        %53 = arith.subf %51, %52 : vector<1x128xf32>
        %c0_38 = arith.constant 0 : index
        %c0_39 = arith.constant 0 : index
        %54 = vector.load %arg10[%c0_38, %c0_39] : memref<1x128xf32, #tpu.memory_space<vmem>>, vector<1x128xf32>
        tpu.vector_store %arg10[%c0_38, %c0_39], %53 {strides = array<i32>} : memref<1x128xf32, #tpu.memory_space<vmem>>, vector<1x128xf32>,
      } else {
      }
    } else {
    }
    %c1_i32 = arith.constant 1 : i32
    %10 = arith.cmpi eq, %arg0, %c1_i32 : i32
    %11 = arith.extui %10 : i1 to i32
    %c0_i32_8 = arith.constant 0 : i32
    %12 = arith.cmpi ne, %11, %c0_i32_8 : i32
    scf.if %12 {
      %c0_9 = arith.constant 0 : index
      %c0_10 = arith.constant 0 : index
      %13 = vector.load %arg9[%c0_9, %c0_10] : memref<1x128xf32, #tpu.memory_space<vmem>>, vector<1x128xf32>
      %c0_11 = arith.constant 0 : index
      %c0_12 = arith.constant 0 : index
      %14 = vector.load %arg10[%c0_11, %c0_12] : memref<1x128xf32, #tpu.memory_space<vmem>>, vector<1x128xf32>
      %15 = vector.broadcast %13 : vector<1x128xf32> to vector<16x128xf32>
      %16 = arith.mulf %3, %15 : vector<16x128xf32>
      %17 = vector.broadcast %14 : vector<1x128xf32> to vector<16x128xf32>
      %18 = arith.addf %16, %17 : vector<16x128xf32>
      %cst_13 = arith.constant 0.000000e+00 : f32
      %19 = vector.broadcast %cst_13 : f32 to vector<16x128xf32>
      %20 = arith.maximumf %18, %19 : vector<16x128xf32>
      %21 = vector.broadcast %13 : vector<1x128xf32> to vector<16x128xf32>
      %22 = arith.mulf %6, %21 : vector<16x128xf32>
      %23 = vector.broadcast %14 : vector<1x128xf32> to vector<16x128xf32>
      %24 = arith.addf %22, %23 : vector<16x128xf32>
      %cst_14 = arith.constant 0.000000e+00 : f32
      %25 = vector.broadcast %cst_14 : f32 to vector<16x128xf32>
      %26 = arith.maximumf %24, %25 : vector<16x128xf32>
      %27 = arith.maximumf %20, %26 : vector<16x128xf32>
      %c0_15 = arith.constant 0 : index
      %c0_16 = arith.constant 0 : index
      %28 = vector.load %arg6[%c0_15, %c0_16] : memref<16x128xf32, #tpu.memory_space<vmem>>, vector<16x128xf32>
      tpu.vector_store %arg6[%c0_15, %c0_16], %27 {strides = array<i32>} : memref<16x128xf32, #tpu.memory_space<vmem>>, vector<16x128xf32>,
    } else {
    }
    return
  }
  func.func @transform_0(%arg0: i32, %arg1: i32) -> (i32, i32, i32) {
    %c0_i32 = arith.constant 0 : i32
    %c0_i32_0 = arith.constant 0 : i32
    %c0_i32_1 = arith.constant 0 : i32
    return %c0_i32, %arg1, %c0_i32_0 : i32, i32, i32
  }
  func.func @transform_1(%arg0: i32, %arg1: i32) -> (i32, i32) {
    %c0_i32 = arith.constant 0 : i32
    %c0_i32_0 = arith.constant 0 : i32
    %c0_i32_1 = arith.constant 0 : i32
    return %c0_i32, %c0_i32_0 : i32, i32
  }
  func.func @transform_2(%arg0: i32, %arg1: i32) -> (i32, i32) {
    %c0_i32 = arith.constant 0 : i32
    %c0_i32_0 = arith.constant 0 : i32
    %c0_i32_1 = arith.constant 0 : i32
    return %c0_i32, %c0_i32_0 : i32, i32
  }
  func.func @transform_3(%arg0: i32, %arg1: i32) -> (i32, i32) {
    %c0_i32 = arith.constant 0 : i32
    %c0_i32_0 = arith.constant 0 : i32
    %c0_i32_1 = arith.constant 0 : i32
    return %c0_i32, %c0_i32_0 : i32, i32
  }
  func.func @transform_4(%arg0: i32, %arg1: i32) -> (i32, i32) {
    %0 = arith.muli %arg0, %arg1 : i32
    %c0_i32 = arith.constant 0 : i32
    %c0_i32_0 = arith.constant 0 : i32
    return %0, %c0_i32 : i32, i32
  }
}

</mosaic_0001>

<llo_original>
// kernel: tpu_custom_call.1
$region0: #{tpu_custom_call.1}
  #allocation0 [shape = 'u32[]', space=smem, size = 0x4, offset = 0x4, fixed_abs, tag = 'smem constant byte address 0x4 - core index']
  #allocation1 [shape = 'u32[72,128]{1,0:T(1,128)}', space=vmem, size = 0x9000, scoped, tag = 'internal scratch']
  #allocation2 [shape = 'f32[1,128]{1,0:T(1,128)}', space=vmem, size = 0x200, scoped, tag = 'scratch operand']
  #allocation3 [shape = 'f32[1,128]{1,0:T(1,128)}', space=vmem, size = 0x200, scoped, tag = 'scratch operand']
  #allocation4 [shape = 'f32[1,128]{1,0:T(1,128)}', space=vmem, size = 0x200, scoped, tag = 'scratch operand']
  #allocation5 [shape = 'f32[1,128]{1,0:T(1,128)}', space=vmem, size = 0x200, scoped, tag = 'scratch operand']
  %s0 = inlined_call_operand.vmem [shape: bf16[2,32,12], index: 0, kind: input, shape index: {}]
  %s1 = inlined_call_operand.vmem [shape: bf16[12,128], index: 1, kind: input, shape index: {}]
  %s2 = inlined_call_operand.vmem [shape: f32[1,128], index: 2, kind: input, shape index: {}]
  %s3 = inlined_call_operand.vmem [shape: f32[1,128], index: 3, kind: input, shape index: {}]
  %s4 = inlined_call_operand.hbm [shape: f32[32,128], index: 4, kind: output, shape index: {}]
  %s5 = sld [smem:[#allocation0]]
  $region106: #{tpu_custom_call.1} parent=0
    _
  %s7 = ssub.s32 1, %s5
  %s8 = scalar_select 0, %s7, %s5
  $region1: #{tpu_custom_call.1} parent=0
    #allocation6 [shape = 'u8[16384]{0}', space=vmem, size = 0x4000, scoped, tag = 'input window, operand 0']
    #allocation7 [shape = 'u8[16384]{0}', space=vmem, size = 0x4000, scoped, tag = 'output window, operand 0']
    #allocation8 [shape = 's32[2]{0}', space=sflag, size = 0x8, scoped, tag = 'scoped memory for tpu_custom_call.1']
    %9 = vsyncpa [#allocation8], 0
    %s10 = scalar_lea.sflag [#allocation8], 1
    %11 = vsyncpa %s10, 0
    loop: start=0, step=1, limit=6
    $region2: #{tpu_custom_call.1} parent=1 // loop_pre_header
      _
    $region3: #{tpu_custom_call.1} parent=1 // loop_header
      %s13 = sphi 0, %s17
      %p14 = scmp.ge.s32.totalorder %s13, 6
      %s20 = sphi 0, %s32
      %s21 = sphi 0, %s28
      %s22 = sphi 0, %s20
      %s23 = sphi 0, %s21
      %s24 = sphi 0, %s22
      %s25 = sphi 0, %s23
      %s35 = sphi 0, %s37
      %s38 = sphi 0, %s35
      %s39 = sphi 0, %s38
      %s55 = sphi 0, %s39
      %s59 = sphi 0, %s59
      %s61 = sphi 0, %s59
      %s62 = sphi 0, %s61
      %s76 = sphi 0, %s62
      %s80 = sphi 0, %s80
      %s82 = sphi 0, %s80
      %s83 = sphi 0, %s82
      %s97 = sphi 0, %s83
      %s101 = sphi 0, %s101
      %s103 = sphi 0, %s101
      %s104 = sphi 0, %s103
      %s118 = sphi 0, %s104
      %s126 = sphi 0, %s128
      %s129 = sphi 0, %s126
      %s130 = sphi 0, %s129
      %s146 = sphi 0, %s130
    $region4: #{tpu_custom_call.1} parent=1 // loop_header_branch
      %16 = sbr.rel (%p14) target = $region8
    $region5: #{tpu_custom_call.1} parent=1 // loop_body
      %s18 = ssub.s32 %s13, 1
      %s19 = ssub.s32 %s13, 2
      %s26 = sadd.s32 1, %s21
      %p27 = scmp.ge.s32.totalorder %s26, 2
      %s28 = scalar_select %p27, 0, %s26
      %s29 = sadd.s32 1, %s20
      %s30 = scalar_select %p27, %s29, %s20
      %p31 = scmp.ge.s32.totalorder %s30, 2
      %s32 = scalar_select %p31, 0, %s30
      %s33 = ssub.s32 %s21, %s28
      %p34 = scmp.eq.s32.totalorder %s33, 0
      %s36 = sadd.s32 %s35, 1
      %s37 = scalar_select %p34, %s35, %s36
      %p40 = pneg %p34
      %p41 = scmp.eq.s32.totalorder %s13, 3
      %p42 = por %p40, %p41
      %p43 = scmp.ne.s32.totalorder %s35, %s38
      %p44 = scmp.eq.s32.totalorder %s13, 0
      %p45 = por %p43, %p44
      %p46 = scmp.ne.s32.totalorder %s35, %s38
      %p47 = scmp.eq.s32.totalorder %s18, 3
      %p48 = por %p46, %p47
      %p49 = scmp.ne.s32.totalorder %s38, %s39
      %p50 = scmp.eq.s32.totalorder %s18, 0
      %p51 = por %p49, %p50
      %p52 = scmp.ne.s32.totalorder %s38, %s39
      %p53 = scmp.eq.s32.totalorder %s19, 3
      %p54 = por %p52, %p53
      %p56 = scmp.ne.s32.totalorder %s39, %s55
      %p57 = scmp.eq.s32.totalorder %s19, 0
      %p58 = por %p56, %p57
      %s60 = sadd.s32 %s59, 1
      %p63 = scmp.eq.s32.totalorder %s13, 3
      %p64 = scmp.ne.s32.totalorder %s59, %s61
      %p65 = scmp.eq.s32.totalorder %s13, 0
      %p66 = por %p64, %p65
      %p67 = scmp.ne.s32.totalorder %s59, %s61
      %p68 = scmp.eq.s32.totalorder %s18, 3
      %p69 = por %p67, %p68
      %p70 = scmp.ne.s32.totalorder %s61, %s62
      %p71 = scmp.eq.s32.totalorder %s18, 0
      %p72 = por %p70, %p71
      %p73 = scmp.ne.s32.totalorder %s61, %s62
      %p74 = scmp.eq.s32.totalorder %s19, 3
      %p75 = por %p73, %p74
      %p77 = scmp.ne.s32.totalorder %s62, %s76
      %p78 = scmp.eq.s32.totalorder %s19, 0
      %p79 = por %p77, %p78
      %s81 = sadd.s32 %s80, 1
      %p84 = scmp.eq.s32.totalorder %s13, 3
      %p85 = scmp.ne.s32.totalorder %s80, %s82
      %p86 = scmp.eq.s32.totalorder %s13, 0
      %p87 = por %p85, %p86
      %p88 = scmp.ne.s32.totalorder %s80, %s82
      %p89 = scmp.eq.s32.totalorder %s18, 3
      %p90 = por %p88, %p89
      %p91 = scmp.ne.s32.totalorder %s82, %s83
      %p92 = scmp.eq.s32.totalorder %s18, 0
      %p93 = por %p91, %p92
      %p94 = scmp.ne.s32.totalorder %s82, %s83
      %p95 = scmp.eq.s32.totalorder %s19, 3
      %p96 = por %p94, %p95
      %p98 = scmp.ne.s32.totalorder %s83, %s97
      %p99 = scmp.eq.s32.totalorder %s19, 0
      %p100 = por %p98, %p99
      %s102 = sadd.s32 %s101, 1
      %p105 = scmp.eq.s32.totalorder %s13, 3
      %p106 = scmp.ne.s32.totalorder %s101, %s103
      %p107 = scmp.eq.s32.totalorder %s13, 0
      %p108 = por %p106, %p107
      %p109 = scmp.ne.s32.totalorder %s101, %s103
      %p110 = scmp.eq.s32.totalorder %s18, 3
      %p111 = por %p109, %p110
      %p112 = scmp.ne.s32.totalorder %s103, %s104
      %p113 = scmp.eq.s32.totalorder %s18, 0
      %p114 = por %p112, %p113
      %p115 = scmp.ne.s32.totalorder %s103, %s104
      %p116 = scmp.eq.s32.totalorder %s19, 3
      %p117 = por %p115, %p116
      %p119 = scmp.ne.s32.totalorder %s104, %s118
      %p120 = scmp.eq.s32.totalorder %s19, 0
      %p121 = por %p119, %p120
      %s122 = smul.u32 %s20, %s21
      %s123 = smul.u32 %s32, %s28
      %s124 = ssub.s32 %s122, %s123
      %p125 = scmp.eq.s32.totalorder %s124, 0
      %s127 = sadd.s32 %s126, 1
      %s128 = scalar_select %p125, %s126, %s127
      %p131 = pneg %p125
      %p132 = scmp.eq.s32.totalorder %s13, 3
      %p133 = por %p131, %p132
      %p134 = scmp.ne.s32.totalorder %s126, %s129
      %p135 = scmp.eq.s32.totalorder %s13, 0
      %p136 = por %p134, %p135
      %p137 = scmp.ne.s32.totalorder %s126, %s129
      %p138 = scmp.eq.s32.totalorder %s18, 3
      %p139 = por %p137, %p138
      %p140 = scmp.ne.s32.totalorder %s129, %s130
      %p141 = scmp.eq.s32.totalorder %s18, 0
      %p142 = por %p140, %p141
      %p143 = scmp.ne.s32.totalorder %s129, %s130
      %p144 = scmp.eq.s32.totalorder %s19, 3
      %p145 = por %p143, %p144
      %p147 = scmp.ne.s32.totalorder %s130, %s146
      %p148 = scmp.eq.s32.totalorder %s19, 0
      %p149 = por %p147, %p148
      %p150 = scmp.le.s32.totalorder 1, %s13
      %p151 = scmp.lt.s32.totalorder %s13, 5
      %p152 = pnand %p150, %p151
      %p153 = pneg %p152
      // Predicated region
      $region9: #{tpu_custom_call.1} parent=5 // pred_check
        _
      $region10: #{tpu_custom_call.1} parent=5 // pred_check_branch
        %155 = sbr.rel (%p152) target = $region12
      $region11: #{tpu_custom_call.1} parent=5 // pred_region
        %s156 = ssub.s32 %s13, 1
        // Predicated region
        $region13: #{tpu_custom_call.1} parent=11 // pred_check
          %p157 = pneg %p72
        $region14: #{tpu_custom_call.1} parent=11 // pred_check_branch
          %159 = sbr.rel (%p157) target = $region16
        $region15: #{tpu_custom_call.1} parent=11 // pred_region
          _
        $region16: #{tpu_custom_call.1} parent=11 // pred_fallthru
          _
        // Predicated region
        $region17: #{tpu_custom_call.1} parent=11 // pred_check
          %p160 = pneg %p93
        $region18: #{tpu_custom_call.1} parent=11 // pred_check_branch
          %162 = sbr.rel (%p160) target = $region20
        $region19: #{tpu_custom_call.1} parent=11 // pred_region
          _
        $region20: #{tpu_custom_call.1} parent=11 // pred_fallthru
          _
        // Predicated region
        $region21: #{tpu_custom_call.1} parent=11 // pred_check
          %p163 = pneg %p114
        $region22: #{tpu_custom_call.1} parent=11 // pred_check_branch
          %165 = sbr.rel (%p163) target = $region24
        $region23: #{tpu_custom_call.1} parent=11 // pred_region
          _
        $region24: #{tpu_custom_call.1} parent=11 // pred_fallthru
          _
      $region12: #{tpu_custom_call.1} parent=5 // pred_fallthru
        _
      %p166 = scmp.lt.s32.totalorder %s13, 4
      // Predicated region
      $region25: #{tpu_custom_call.1} parent=5 // pred_check
        %p167 = pneg %p166
      $region26: #{tpu_custom_call.1} parent=5 // pred_check_branch
        %169 = sbr.rel (%p167) target = $region28
      $region27: #{tpu_custom_call.1} parent=5 // pred_region
        // Predicated region
        $region29: #{tpu_custom_call.1} parent=27 // pred_check
          %p170 = pneg %p45
        $region30: #{tpu_custom_call.1} parent=27 // pred_check_branch
          %172 = sbr.rel (%p170) target = $region32
        $region31: #{tpu_custom_call.1} parent=27 // pred_region
          %s173 = sand.u32 %s35, 1
          %s174 = sand.u32 %s35, 1
          %s175 = smul.addr %s174, 16
          %s176 = scalar_lea.vmem [#allocation6], %s175
          %s177 = smul.u32 2, %s21
          %s178 = smul.addr %s177, 4
          %s179 = scalar_lea.vmem %s0, %s178
          // Predicated region
          $region33: #{tpu_custom_call.1} parent=31 // pred_check
            _
          $region34: #{tpu_custom_call.1} parent=31 // pred_check_branch
            %181 = sbr.rel (0) target = $region36
          $region35: #{tpu_custom_call.1} parent=31 // pred_region
            // Predicated region
            $region37: #{tpu_custom_call.1} parent=35 // pred_check
              _
            $region38: #{tpu_custom_call.1} parent=35 // pred_check_branch
              %183 = sbr.rel target = $region40
            $region39: #{tpu_custom_call.1} parent=35 // pred_region
              // Predicated region
              $region52: #{tpu_custom_call.1} parent=39 // pred_check
                _
              $region53: #{tpu_custom_call.1} parent=39 // pred_check_branch
                %205 = sbr.rel (0) target = $region55
              $region54: #{tpu_custom_call.1} parent=39 // pred_region
                loop: start=0, step=1, limit=1
                $region56: #{tpu_custom_call.1} parent=54 // loop_pre_header
                  _
                $region57: #{tpu_custom_call.1} parent=54 // loop_header
                  %s207 = sphi 0, %s211
                  %p208 = scmp.ge.s32.totalorder %s207, 1
                  %s212 = sphi %s179, %s179
                  %s213 = sphi %s176, %s176
                $region58: #{tpu_custom_call.1} parent=54 // loop_header_branch
                  %210 = sbr.rel (%p208) target = $region62
                $region59: #{tpu_custom_call.1} parent=54 // loop_body
                  _
                $region60: #{tpu_custom_call.1} parent=54 // loop_footer
                  %s211 = sadd.s32 1, %s207
                $region61: #{tpu_custom_call.1} parent=54 // loop_footer_branch
                  %206 = sbr.rel target = $region57
                $region62: #{tpu_custom_call.1} parent=54 // loop_exit
                  _
                %s215 = ssub.s32 16, 1
                loop: start=0, step=1, limit=1
                $region63: #{tpu_custom_call.1} parent=54 // loop_pre_header
                  _
                $region64: #{tpu_custom_call.1} parent=54 // loop_header
                  %s217 = sphi 0, %s221
                  %p218 = scmp.ge.s32.totalorder %s217, 1
                  %s222 = sphi %s179, %s179
                  %s223 = sphi %s176, %s176
                $region65: #{tpu_custom_call.1} parent=54 // loop_header_branch
                  %220 = sbr.rel (%p218) target = $region69
                $region66: #{tpu_custom_call.1} parent=54 // loop_body
                  %v224 = vld [vmem:[%s222] sm:%s215]
                  %225 = vst [vmem:[%s223] sm:%s215] %v224
                  %v226 = vld [vmem:[%s222 + $0x4] sm:%s215]
                  %227 = vst [vmem:[%s223 + $0x4] sm:%s215] %v226
                  %v228 = vld [vmem:[%s222 + $0x10] sm:%s215]
                  %229 = vst [vmem:[%s223 + $0x8] sm:%s215] %v228
                  %v230 = vld [vmem:[%s222 + $0x14] sm:%s215]
                  %231 = vst [vmem:[%s223 + $0xc] sm:%s215] %v230
                $region67: #{tpu_custom_call.1} parent=54 // loop_footer
                  %s221 = sadd.s32 1, %s217
                $region68: #{tpu_custom_call.1} parent=54 // loop_footer_branch
                  %216 = sbr.rel target = $region64
                $region69: #{tpu_custom_call.1} parent=54 // loop_exit
                  _
              $region55: #{tpu_custom_call.1} parent=39 // pred_fallthru
                _
            $region40: #{tpu_custom_call.1} parent=35 // pred_fallthru
              _
            // Predicated region
            $region41: #{tpu_custom_call.1} parent=35 // pred_check
              _
            $region42: #{tpu_custom_call.1} parent=35 // pred_check_branch
              %185 = sbr.rel (0) target = $region44
            $region43: #{tpu_custom_call.1} parent=35 // pred_region
              %s187 = ssub.s32 16, 1
              loop: start=0, step=1, limit=1
              $region45: #{tpu_custom_call.1} parent=43 // loop_pre_header
                _
              $region46: #{tpu_custom_call.1} parent=43 // loop_header
                %s189 = sphi 0, %s193
                %p190 = scmp.ge.s32.totalorder %s189, 1
                %s194 = sphi %s179, %s179
                %s195 = sphi %s176, %s176
              $region47: #{tpu_custom_call.1} parent=43 // loop_header_branch
                %192 = sbr.rel (%p190) target = $region51
              $region48: #{tpu_custom_call.1} parent=43 // loop_body
                %v196 = vld [vmem:[%s194] sm:%s187]
                %197 = vst [vmem:[%s195] sm:%s187] %v196
                %v198 = vld [vmem:[%s194 + $0x4] sm:%s187]
                %199 = vst [vmem:[%s195 + $0x4] sm:%s187] %v198
                %v200 = vld [vmem:[%s194 + $0x10] sm:%s187]
                %201 = vst [vmem:[%s195 + $0x8] sm:%s187] %v200
                %v202 = vld [vmem:[%s194 + $0x14] sm:%s187]
                %203 = vst [vmem:[%s195 + $0xc] sm:%s187] %v202
              $region49: #{tpu_custom_call.1} parent=43 // loop_footer
                %s193 = sadd.s32 1, %s189
              $region50: #{tpu_custom_call.1} parent=43 // loop_footer_branch
                %188 = sbr.rel target = $region46
              $region51: #{tpu_custom_call.1} parent=43 // loop_exit
                _
            $region44: #{tpu_custom_call.1} parent=35 // pred_fallthru
              _
          $region36: #{tpu_custom_call.1} parent=31 // pred_fallthru
            _
          %232 = vnop
        $region32: #{tpu_custom_call.1} parent=27 // pred_fallthru
          _
      $region28: #{tpu_custom_call.1} parent=5 // pred_fallthru
        _
      %p233 = scmp.le.s32.totalorder 1, %s13
      %p234 = scmp.lt.s32.totalorder %s13, 5
      %p235 = pnand %p233, %p234
      %p236 = pneg %p235
      // Predicated region
      $region70: #{tpu_custom_call.1} parent=5 // pred_check
        _
      $region71: #{tpu_custom_call.1} parent=5 // pred_check_branch
        %238 = sbr.rel (%p235) target = $region73
      $region72: #{tpu_custom_call.1} parent=5 // pred_region
        %s239 = ssub.s32 %s13, 1
        %s240 = sand.u32 %s38, 1
        %s241 = sand.u32 %s38, 1
        %s242 = smul.addr %s241, 16
        %s243 = scalar_lea.vmem [#allocation6], %s242
        // Predicated region
        $region74: #{tpu_custom_call.1} parent=72 // pred_check
          %p244 = pneg %p51
        $region75: #{tpu_custom_call.1} parent=72 // pred_check_branch
          %246 = sbr.rel (%p244) target = $region77
        $region76: #{tpu_custom_call.1} parent=72 // pred_region
          _
        $region77: #{tpu_custom_call.1} parent=72 // pred_fallthru
          _
        %s247 = sand.u32 %s38, 1
        %s248 = sand.u32 %s38, 1
        %s249 = smul.addr %s248, 16
        %s250 = scalar_lea.vmem [#allocation6], %s249
        %p251 = pneg %p51
        %p252 = pneg %p48
        %p253 = pneg %p72
        %p254 = pneg %p69
        %p255 = pneg %p93
        %p256 = pneg %p90
        %p257 = pneg %p114
        %p258 = pneg %p111
        %p259 = pneg %p142
        %p260 = pneg %p139
        %s261 = sand.u32 %s129, 1
        %s262 = scalar_lea.sflag [#allocation8], %s261
        %s263 = sand.u32 %s129, 1
        %s264 = smul.addr %s263, 16
        %s265 = scalar_lea.vmem [#allocation7], %s264
        %s266 = smul.u32 2, %s23
        %s267 = smul.u32 %s22, %s23
        %s268 = smul.u32 2, %s267
        %v270 = vld [vmem:[%s1] sm:$0xf]
        %v271 = vld [vmem:[%s1 + $0x4] sm:$0x3]
        %v272 = vld [vmem:[%s243] sm:$0xf]
        %v273 = vld [vmem:[%s243 + $0x4] sm:$0xf]
        %v276 = vunpack.c.l.b16 %v272
        %v277 = vunpack.c.l.b16 %v273
        %v278 = vpack.c.b16 %v277, %v276
        %v281 = vunpack.c.l.b16 %v270
        %v282 = vunpack.c.l.b16 %v271
        %v283 = vpack.c.b16 %v282, %v281
        %vm284 = vcmask 97280
        %v286 = vsel %vm284, %v278, 0
        %vm288 = vcmask 1045504
        %v290 = vsel %vm288, %v283, 0
        %292 = vmatpush.bf16.msra.mxu0 0
        %293 = vmatpush.bf16.msra.mxu0 0
        %294 = vmatpush.bf16.msra.mxu0 0
        %295 = vmatpush.bf16.msra.mxu0 0
        %296 = vmatpush.bf16.msra.mxu0 0
        %297 = vmatpush.bf16.msra.mxu0 0
        %298 = vmatpush.bf16.msra.mxu0 0
        %299 = vmatpush.bf16.msra.mxu0 %v290
        %300 = vmatmul.bf16.gmra.mxu0 %v286
        %v301 = vpop.f32.mrf.mxu0
        %v302 = vadd.f32 0.0, %v301
        %v303 = vpop.f32.mrf.mxu0
        %v304 = vadd.f32 0.0, %v303
        %305 = vdwg.mxu0
        %s306 = scalar_lea.vmem %s243, 8 [#allocation6]
        %v307 = vld [vmem:[%s306] sm:$0xf]
        %v308 = vld [vmem:[%s306 + $0x4] sm:$0xf]
        %v311 = vunpack.c.l.b16 %v307
        %v312 = vunpack.c.l.b16 %v308
        %v313 = vpack.c.b16 %v312, %v311
        %v315 = vsel %vm284, %v313, 0
        %317 = vmatpush.bf16.msra.mxu0 0
        %318 = vmatpush.bf16.msra.mxu0 0
        %319 = vmatpush.bf16.msra.mxu0 0
        %320 = vmatpush.bf16.msra.mxu0 0
        %321 = vmatpush.bf16.msra.mxu0 0
        %322 = vmatpush.bf16.msra.mxu0 0
        %323 = vmatpush.bf16.msra.mxu0 0
        %324 = vmatpush.bf16.msra.mxu0 %v290
        %325 = vmatmul.bf16.gmra.mxu0 %v315
        %v326 = vpop.f32.mrf.mxu0
        %v327 = vadd.f32 0.0, %v326
        %v328 = vpop.f32.mrf.mxu0
        %v329 = vadd.f32 0.0, %v328
        %330 = vdwg.mxu0
        %p331 = scmp.eq.s32.totalorder %s22, 0
        // Predicated region
        $region78: #{tpu_custom_call.1} parent=72 // pred_check
          %p332 = pneg %p331
        $region79: #{tpu_custom_call.1} parent=72 // pred_check_branch
          %334 = sbr.rel (%p332) target = $region81
        $region80: #{tpu_custom_call.1} parent=72 // pred_region
          %p335 = scmp.eq.s32.totalorder %s23, 0
          // Predicated region
          $region82: #{tpu_custom_call.1} parent=80 // pred_check
            %p336 = pneg %p335
          $region83: #{tpu_custom_call.1} parent=80 // pred_check_branch
            %338 = sbr.rel (%p336) target = $region85
          $region84: #{tpu_custom_call.1} parent=80 // pred_region
            %339 = vst [vmem:[#allocation2] sm:$0x1] 0.0
            %340 = vst [vmem:[#allocation3] sm:$0x1] 0.0
          $region85: #{tpu_custom_call.1} parent=80 // pred_fallthru
            _
          %v341 = vld [vmem:[#allocation2] sm:$0x1]
          %v342 = vadd.f32 %v302, %v304
          %v343 = vrot.slane %v342, 4
          %v344 = vadd.f32 %v342, %v343
          %v345 = vrot.slane %v344, 2
          %v346 = vadd.f32 %v344, %v345
          %v347 = vrot.slane %v346, 1
          %v348 = vadd.f32 %v346, %v347
          %v349 = vadd.f32 %v327, %v329
          %v350 = vrot.slane %v349, 4
          %v351 = vadd.f32 %v349, %v350
          %v352 = vrot.slane %v351, 2
          %v353 = vadd.f32 %v351, %v352
          %v354 = vrot.slane %v353, 1
          %v355 = vadd.f32 %v353, %v354
          %v356 = vadd.f32 %v348, %v355
          %v357 = vadd.f32 %v341, %v356
          %358 = vst [vmem:[#allocation2] sm:$0x1] %v357
          %v359 = vld [vmem:[#allocation3] sm:$0x1]
          %v360 = vmul.f32 %v302, %v302
          %v361 = vmul.f32 %v304, %v304
          %v362 = vadd.f32 %v360, %v361
          %v363 = vrot.slane %v362, 4
          %v364 = vadd.f32 %v362, %v363
          %v365 = vrot.slane %v364, 2
          %v366 = vadd.f32 %v364, %v365
          %v367 = vrot.slane %v366, 1
          %v368 = vadd.f32 %v366, %v367
          %v369 = vmul.f32 %v327, %v327
          %v370 = vmul.f32 %v329, %v329
          %v371 = vadd.f32 %v369, %v370
          %v372 = vrot.slane %v371, 4
          %v373 = vadd.f32 %v371, %v372
          %v374 = vrot.slane %v373, 2
          %v375 = vadd.f32 %v373, %v374
          %v376 = vrot.slane %v375, 1
          %v377 = vadd.f32 %v375, %v376
          %v378 = vadd.f32 %v368, %v377
          %v379 = vadd.f32 %v359, %v378
          %380 = vst [vmem:[#allocation3] sm:$0x1] %v379
          %p381 = scmp.eq.s32.totalorder %s23, 1
          // Predicated region
          $region86: #{tpu_custom_call.1} parent=80 // pred_check
            %p382 = pneg %p381
          $region87: #{tpu_custom_call.1} parent=80 // pred_check_branch
            %384 = sbr.rel (%p382) target = $region89
          $region88: #{tpu_custom_call.1} parent=80 // pred_region
            %v385 = vld [vmem:[#allocation2] sm:$0x1]
            %v386 = vmul.f32 %v385, 0.015625
            %v387 = vld [vmem:[#allocation3] sm:$0x1]
            %v388 = vmul.f32 %v387, 0.015625
            %v389 = vmul.f32 %v386, %v386
            %v390 = vsub.f32 %v388, %v389
            %v391 = vld [vmem:[%s2] sm:$0x1]
            %v392 = vadd.f32 %v390, 1e-05
            %v393 = vrsqrt.pop %v392
            %v394 = vmul.f32 %v393, %v392
            %v395 = vmul.f32 %v394, %v393
            %v396 = vmul.f32 0.5, %v395
            %v397 = vsub.f32 1.5, %v396
            %v398 = vmul.f32 %v393, %v397
            %vm399 = vweird.f32 %v392
            %vm400 = vweird.f32 %v393
            %vm401 = vmor %vm399, %vm400
            %v402 = vsel %vm401, %v393, %v398
            %v403 = vmul.f32 %v391, %v402
            %404 = vst [vmem:[#allocation4] sm:$0x1] %v403
            %v405 = vld [vmem:[%s3] sm:$0x1]
            %v406 = vmul.f32 %v386, %v403
            %v407 = vsub.f32 %v405, %v406
            %408 = vst [vmem:[#allocation5] sm:$0x1] %v407
          $region89: #{tpu_custom_call.1} parent=80 // pred_fallthru
            _
        $region81: #{tpu_custom_call.1} parent=72 // pred_fallthru
          _
        %p409 = scmp.eq.s32.totalorder %s22, 1
        // Predicated region
        $region90: #{tpu_custom_call.1} parent=72 // pred_check
          %p410 = pneg %p409
        $region91: #{tpu_custom_call.1} parent=72 // pred_check_branch
          %412 = sbr.rel (%p410) target = $region93
        $region92: #{tpu_custom_call.1} parent=72 // pred_region
          %v413 = vld [vmem:[#allocation4] sm:$0x1]
          %v414 = vld [vmem:[#allocation5] sm:$0x1]
          %v416 = vperm.slane %v413, 0
          %v418 = vmul.f32 %v302, %v416
          %v419 = vmul.f32 %v304, %v416
          %v421 = vperm.slane %v414, 0
          %v423 = vadd.f32 %v418, %v421
          %v424 = vadd.f32 %v419, %v421
          %v425 = vmax.f32 %v423, 0.0
          %v426 = vmax.f32 %v424, 0.0
          %v427 = vmul.f32 %v327, %v416
          %v428 = vmul.f32 %v329, %v416
          %v429 = vadd.f32 %v427, %v421
          %v430 = vadd.f32 %v428, %v421
          %v431 = vmax.f32 %v429, 0.0
          %v432 = vmax.f32 %v430, 0.0
          %v433 = vmax.f32 %v425, %v431
          %v434 = vmax.f32 %v426, %v432
          %435 = vst [vmem:[%s265] sm:$0xff] %v433
          %436 = vst [vmem:[%s265 + $0x8] sm:$0xff] %v434
        $region93: #{tpu_custom_call.1} parent=72 // pred_fallthru
          _
        %s437 = sand.u32 %s129, 1
        %s438 = scalar_lea.sflag [#allocation8], %s437
        %s439 = sand.u32 %s129, 1
        %s440 = smul.addr %s439, 16
        %s441 = scalar_lea.vmem [#allocation7], %s440
        // Predicated region
        $region94: #{tpu_custom_call.1} parent=72 // pred_check
          %p442 = pneg %p139
        $region95: #{tpu_custom_call.1} parent=72 // pred_check_branch
          %444 = sbr.rel (%p442) target = $region97
        $region96: #{tpu_custom_call.1} parent=72 // pred_region
          %s445 = smul.u32 %s22, %s23
          %s446 = smul.u32 2, %s445
          %448 = vsyncadd %s438, 0
          %s449 = smul.addr %s446, 8
          %s450 = scalar_lea.hbm %s4, %s449
          %s451 = sshll.u32 %s441, 4
          %s452 = int_to_ptr.vmem [resolvable:$true] %s451
          %s453 = sshll.u32 %s450, 4
          %s454 = int_to_ptr.hbm [resolvable:$true] %s453
          %459 = dma.vmem_to_hbm [thread:$0]  %s452, 256, %s454, %s438, 128, 128, 8
        $region97: #{tpu_custom_call.1} parent=72 // pred_fallthru
          _
      $region73: #{tpu_custom_call.1} parent=5 // pred_fallthru
        _
      %p460 = scmp.le.s32.totalorder 2, %s13
      // Predicated region
      $region98: #{tpu_custom_call.1} parent=5 // pred_check
        %p461 = pneg %p460
      $region99: #{tpu_custom_call.1} parent=5 // pred_check_branch
        %463 = sbr.rel (%p461) target = $region101
      $region100: #{tpu_custom_call.1} parent=5 // pred_region
        %s464 = ssub.s32 %s13, 2
        // Predicated region
        $region102: #{tpu_custom_call.1} parent=100 // pred_check
          %p465 = pneg %p145
        $region103: #{tpu_custom_call.1} parent=100 // pred_check_branch
          %467 = sbr.rel (%p465) target = $region105
        $region104: #{tpu_custom_call.1} parent=100 // pred_region
          %s468 = sand.u32 %s130, 1
          %s469 = scalar_lea.sflag [#allocation8], %s468
          %s470 = sand.u32 %s130, 1
          %s471 = smul.addr %s470, 16
          %s472 = scalar_lea.vmem [#allocation7], %s471
          %474 = dma.done %s469, 256
        $region105: #{tpu_custom_call.1} parent=100 // pred_fallthru
          _
      $region101: #{tpu_custom_call.1} parent=5 // pred_fallthru
        _
    $region6: #{tpu_custom_call.1} parent=1 // loop_footer
      %s17 = sadd.s32 1, %s13
    $region7: #{tpu_custom_call.1} parent=1 // loop_footer_branch
      %12 = sbr.rel target = $region3
    $region8: #{tpu_custom_call.1} parent=1 // loop_exit
      _
    %475 = vsyncpa [#allocation8], 1
    %s476 = scalar_lea.sflag [#allocation8], 1
    %477 = vsyncpa %s476, 1

</llo_original>
